<compile_context>
chip_gen: v6e
topology: v6e:2x2x1
jax: 0.10.0
libtpu: 0.0.40
codegen_flags: <defaults>
</compile_context>

<pallas_src>
from functools import partial

import jax
import jax.numpy as jnp
from jax.experimental import pallas as pl
from jax.experimental.pallas import tpu as pltpu

NODE_DIM = 3   # nodefeat_num == nodeembed_to
EDGE_DIM = 2   # edgefeat_num == edgeembed_to
BN_EPS = 1e-5
LANE = 128


# ----------------------------------------------------------------------------
# Kernel (transposed / lane-dense layout, lane-padded N/E/G)
# ----------------------------------------------------------------------------
def gnn_kernel(xT_ref, eaT_ref, srcoh_ref, dstohT_ref, pooladdT_ref,
               aux_ref, pslab_ref, out_ref, *, num_real_nodes):
    F = NODE_DIM
    Fe = EDGE_DIM
    Np = xT_ref.shape[1]          # padded nodes on lanes
    Ep = eaT_ref.shape[1]         # padded edges on lanes
    Gp = out_ref.shape[1]         # padded graphs on lanes
    inv_n = 1.0 / float(num_real_nodes)   # compile-time constant

    xT = xT_ref[...]                                     # [F, Np]  f32
    eaT = eaT_ref[...]                                   # [Fe, Ep] f32
    src_oh = srcoh_ref[...]                              # [Np, Ep] bf16 (0/1)
    dst_ohT = dstohT_ref[...]                            # [Ep, Np] bf16 (0/1)
    pool_addT = pooladdT_ref[...]                        # [Np, Gp] bf16 (0/1)
    aux = aux_ref[...]                                   # [8, L]   f32
    inv_deg = aux[0:1, :Np]                              # [1, Np]
    inv_cnt = aux[1:2, :Gp]                              # [1, Gp]
    node_mask = aux[2:3, :Np]                            # [1, Np]  (1 real / 0 pad)

    # ---- unpack the packed parameter slab (static slices, zero-cost views) --
    ps = pslab_ref[...]                                  # [16, 16] f32
    we1T = ps[0:F * F, 0:2]                              # [9, 2]
    be1T = ps[0:F * F, 2:3]                              # [9, 1]
    we2T = ps[0:F * F, 3:5]                              # [9, 2]
    be2T = ps[0:F * F, 5:6]                              # [9, 1]
    r1T = ps[0:F, 6:9]                                   # [3, 3]
    b1T = ps[0:F, 9:10]                                  # [3, 1]
    g1 = ps[0:F, 10:11]                                  # [3, 1]
    bt1 = ps[0:F, 11:12]                                 # [3, 1]
    r2T = ps[F:2 * F, 6:9]
    b2T = ps[F:2 * F, 9:10]
    g2 = ps[F:2 * F, 10:11]
    bt2 = ps[F:2 * F, 11:12]
    wpT = ps[2 * F:2 * F + 1, 6:6 + 2 * F]               # [1, 6]
    bp = ps[2 * F + 1:2 * F + 2, 6:7]                    # [1, 1]

    def nnconv_T(hT, weT, beT, rT, bT, act):
        """PyG NNConv(aggr='mean') in transposed layout.

        Tiny-K contractions (edge net K=2, root K=3) run as unrolled VPU
        broadcast MACs; only the big gather/scatter dots go to the MXU (bf16).
        """
        # edge weight network: [F*F, Fe] x [Fe, Ep] -> [F*F, Ep]  (VPU)
        wacc = jnp.zeros((F * F, Ep), jnp.float32)
        for d in range(Fe):
            wacc = wacc + weT[:, d:d + 1] * eaT[d:d + 1, :]
        wflatT = act(wacc + beT)
        # gather source node features per edge: [F, Np] @ [Np, Ep] (bf16 MXU)
        x_srcT = jnp.dot(hT.astype(jnp.bfloat16), src_oh,
                         preferred_element_type=jnp.float32)
        # per-edge (1xF)@(FxF) matmul: sublane slices + broadcasts (VPU)
        msgT = jnp.zeros((F, Ep), jnp.float32)
        for d in range(F):
            msgT = msgT + x_srcT[d:d + 1, :] * wflatT[d * F:(d + 1) * F, :]
        # scatter-sum to destination nodes (bf16 MXU), then 1/deg on the VPU
        aggrT = jnp.dot(msgT.astype(jnp.bfloat16), dst_ohT,
                        preferred_element_type=jnp.float32) * inv_deg   # [F, Np]
        # root transform (K=F=3) on the VPU, f32
        rootT = jnp.zeros((F, Np), jnp.float32)
        for d in range(F):
            rootT = rootT + rT[:, d:d + 1] * hT[d:d + 1, :]
        return aggrT + rootT + bT

    def bn_T(hT, gamma, beta):
        """BatchNorm1d training mode; masked so padded node columns are ignored."""
        hm = hT * node_mask
        mu = jnp.sum(hm, axis=1, keepdims=True) * inv_n            # [F, 1]
        diff = (hT - mu) * node_mask
        var = jnp.sum(diff * diff, axis=1, keepdims=True) * inv_n  # biased var
        return (hT - mu) * jax.lax.rsqrt(var + BN_EPS) * gamma + beta

    # first NNConv (edge net = Tanh) + BN, second NNConv (edge net = ReLU) + BN
    h = bn_T(nnconv_T(xT, we1T, be1T, r1T, b1T, jnp.tanh), g1, bt1)
    h = bn_T(nnconv_T(h, we2T, be2T, r2T, b2T,
                      lambda z: jnp.maximum(z, 0.0)), g2, bt2)

    # global add pool once ([F, Np] @ [Np, Gp], bf16 MXU); mean pool = rescale
    add_poolT = jnp.dot(h.astype(jnp.bfloat16), pool_addT,
                        preferred_element_type=jnp.float32)         # [F, Gp]
    mean_poolT = add_poolT * inv_cnt

    # predictor Linear(6, 1) on the VPU (split weight avoids a concat)
    logits = jnp.zeros((1, Gp), jnp.float32)
    for d in range(F):
        logits = logits + wpT[:, d:d + 1] * add_poolT[d:d + 1, :]
        logits = logits + wpT[:, F + d:F + d + 1] * mean_poolT[d:d + 1, :]
    logits = logits + bp
    # ELU(alpha=1)
    out_ref[...] = jnp.where(logits > 0.0,
                             logits,
                             jnp.exp(jnp.minimum(logits, 0.0)) - 1.0)


# ----------------------------------------------------------------------------
# Host-side glue
# ----------------------------------------------------------------------------
def _round_up(n, m):
    return ((max(int(n), 1) + m - 1) // m) * m


def _graph_to_dense_padded(edge_index, batch_vector, N, E, G, Np, Ep, Gp):
    """0/1 structure matrices (bf16, exact), lane-padded; sublane-packed aux."""
    src = edge_index[0].astype(jnp.int32)
    dst = edge_index[1].astype(jnp.int32)
    # pad index vectors with -1 so padded edges / nodes never match anything
    src_p = jnp.full((Ep,), -1, jnp.int32).at[:E].set(src)
    dst_p = jnp.full((Ep,), -1, jnp.int32).at[:E].set(dst)
    batch_p = jnp.full((Np,), -1, jnp.int32).at[:N].set(batch_vector.astype(jnp.int32))

    node_ids = jnp.arange(Np, dtype=jnp.int32)
    graph_ids = jnp.arange(Gp, dtype=jnp.int32)

    src_oh = (node_ids[:, None] == src_p[None, :]).astype(jnp.bfloat16)   # [Np, Ep]
    dst_eq = (dst_p[:, None] == node_ids[None, :])                        # [Ep, Np]
    dst_ohT = dst_eq.astype(jnp.bfloat16)
    deg = jnp.sum(dst_eq.astype(jnp.float32), axis=0)                     # [Np]
    inv_deg = 1.0 / jnp.maximum(deg, 1.0)

    pool_eq = (batch_p[:, None] == graph_ids[None, :])                    # [Np, Gp]
    pool_addT = pool_eq.astype(jnp.bfloat16)
    cnt = jnp.sum(pool_eq.astype(jnp.float32), axis=0)                    # [Gp]
    inv_cnt = 1.0 / jnp.maximum(cnt, 1.0)

    node_mask = (jnp.arange(Np) < N).astype(jnp.float32)                  # [Np]

    L = max(Np, Gp)
    aux = jnp.zeros((8, L), jnp.float32)                                  # sublane-packed
    aux = aux.at[0, :Np].set(inv_deg)
    aux = aux.at[1, :Gp].set(inv_cnt)
    aux = aux.at[2, :Np].set(node_mask)
    return src_oh, dst_ohT, pool_addT, aux


def _pack_params(params):
    """Pack all 14 (transposed) parameter tensors into one [16,16] f32 slab."""
    (we1, be1, r1, b1, g1, bt1, we2, be2, r2, b2, g2, bt2, wp, bp) = params
    F = NODE_DIM
    slab = jnp.zeros((16, 16), jnp.float32)
    slab = slab.at[0:F * F, 0:2].set(we1.T)
    slab = slab.at[0:F * F, 2:3].set(be1.T)
    slab = slab.at[0:F * F, 3:5].set(we2.T)
    slab = slab.at[0:F * F, 5:6].set(be2.T)
    slab = slab.at[0:F, 6:9].set(r1.T)
    slab = slab.at[0:F, 9:10].set(b1.T)
    slab = slab.at[0:F, 10:11].set(g1.T)
    slab = slab.at[0:F, 11:12].set(bt1.T)
    slab = slab.at[F:2 * F, 6:9].set(r2.T)
    slab = slab.at[F:2 * F, 9:10].set(b2.T)
    slab = slab.at[F:2 * F, 10:11].set(g2.T)
    slab = slab.at[F:2 * F, 11:12].set(bt2.T)
    slab = slab.at[2 * F:2 * F + 1, 6:6 + 2 * F].set(wp.T)
    slab = slab.at[2 * F + 1:2 * F + 2, 6:7].set(bp)
    return slab


def base_gnn_forward(x, edge_index, edge_attr, batch_vector, num_graphs, params):
    F, Fe = NODE_DIM, EDGE_DIM
    N = x.shape[0]
    E = edge_attr.shape[0]
    G = int(num_graphs)
    # lane-pad everything to multiples of 128 (free host-side work)
    Np, Ep, Gp = _round_up(N, LANE), _round_up(E, LANE), _round_up(G, LANE)

    src_oh, dst_ohT, pool_addT, aux = _graph_to_dense_padded(
        edge_index, batch_vector, N, E, G, Np, Ep, Gp)
    pslab = _pack_params(params)

    xT = jnp.zeros((F, Np), jnp.float32).at[:, :N].set(x.astype(jnp.float32).T)
    eaT = jnp.zeros((Fe, Ep), jnp.float32).at[:, :E].set(edge_attr.astype(jnp.float32).T)

    # advisory cost estimate for the XLA scheduler (padded dims)
    flops_layer = (2 * Fe * F * F * Ep       # edge net (VPU)
                   + 2 * F * Np * Ep         # src gather (MXU)
                   + 2 * F * F * Ep          # per-edge matmul (VPU)
                   + 2 * F * Ep * Np         # dst scatter (MXU)
                   + 2 * F * F * Np          # root (VPU)
                   + 10 * F * Np)            # batchnorm
    flops = 2 * flops_layer + 2 * F * Np * Gp + 2 * (2 * F) * Gp
    cost = pl.CostEstimate(
        flops=int(flops),
        transcendentals=int(F * F * Ep + 2 * F + Gp),
        bytes_accessed=int(2 * Np * Ep * 2 + Np * Gp * 2 + F * Np * 4
                           + Fe * Ep * 4 + 8 * max(Np, Gp) * 4
                           + 16 * 16 * 4 + Gp * 4),
    )

    vmem = pl.BlockSpec(memory_space=pltpu.MemorySpace.VMEM)
    kernel = partial(gnn_kernel, num_real_nodes=N)
    outT = pl.pallas_call(
        kernel,
        out_shape=jax.ShapeDtypeStruct((1, Gp), jnp.float32),   # lane-dense output
        in_specs=[vmem] * 7,
        out_specs=vmem,
        # 48 MiB: above v5e's 16 MiB scoped default, safely below v7x's
        # 64 MiB physical VMEM.  Beyond that size, tile E (see TODO above).
        compiler_params=pltpu.CompilerParams(vmem_limit_bytes=48 * 1024 * 1024),
        cost_estimate=cost,
    )(xT, eaT, src_oh, dst_ohT, pool_addT, aux, pslab)
    return outT[:, :G].T                                        # [G, 1]


# ----------------------------------------------------------------------------
# Pure-JAX f32 reference (same math, original orientation) for a correctness check
# ----------------------------------------------------------------------------
def _reference_forward(x, edge_index, edge_attr, batch_vector, num_graphs, params):
    (we1, be1, r1, b1, g1, bt1, we2, be2, r2, b2, g2, bt2, wp, bp) = params
    F = NODE_DIM
    src, dst = edge_index[0], edge_index[1]
    N = x.shape[0]
    node_ids = jnp.arange(N)
    src_oh = (src[:, None] == node_ids[None, :]).astype(jnp.float32)     # [E, N]
    dst_oh = (dst[None, :] == node_ids[:, None]).astype(jnp.float32)     # [N, E]
    inv_deg = 1.0 / jnp.maximum(dst_oh.sum(axis=1, keepdims=True), 1.0)
    pool_add = (batch_vector[None, :] ==
                jnp.arange(num_graphs)[:, None]).astype(jnp.float32)     # [G, N]
    inv_cnt = 1.0 / jnp.maximum(pool_add.sum(axis=1, keepdims=True), 1.0)

    def nnconv(h, w_e, b_e, root, bias, act):
        wflat = act(edge_attr @ w_e + b_e)                               # [E, F*F]
        x_src = src_oh @ h                                               # [E, F]
        msg = jnp.einsum('ed,edj->ej', x_src, wflat.reshape(-1, F, F))
        aggr = (dst_oh @ msg) * inv_deg
        return aggr + h @ root + bias

    def bn(h, gamma, beta):
        mu = h.mean(0, keepdims=True)
        var = ((h - mu) ** 2).mean(0, keepdims=True)
        return (h - mu) * jax.lax.rsqrt(var + BN_EPS) * gamma + beta

    h = bn(nnconv(x.astype(jnp.float32), we1, be1, r1, b1, jnp.tanh), g1, bt1)
    h = bn(nnconv(h, we2, be2, r2, b2, lambda z: jnp.maximum(z, 0.0)), g2, bt2)
    add_p = pool_add @ h
    pooled = jnp.concatenate([add_p, add_p * inv_cnt], axis=1)
    logits = pooled @ wp + bp
    return jnp.where(logits > 0.0, logits, jnp.exp(jnp.minimum(logits, 0.0)) - 1.0)


# ----------------------------------------------------------------------------
# Deterministic parameter init (weights stored [in, out] for x @ W)
# ----------------------------------------------------------------------------
def _xavier_uniform(key, shape):
    fan_in, fan_out = shape
    bound = (6.0 / (fan_in + fan_out)) ** 0.5
    return jax.random.uniform(key, shape, jnp.float32, -bound, bound)


def init_params(key):
    F, Fe = NODE_DIM, EDGE_DIM
    ks = jax.random.split(key, 5)
    we1 = _xavier_uniform(ks[0], (Fe, F * F))          # NNConv#1 edge-net Linear(2, 9)
    be1 = jnp.zeros((1, F * F), jnp.float32)
    r1 = _xavier_uniform(ks[1], (F, F))                # NNConv#1 root weight
    b1 = jnp.zeros((1, F), jnp.float32)
    g1 = jnp.ones((1, F), jnp.float32)                 # BN#1 gamma
    bt1 = jnp.zeros((1, F), jnp.float32)               # BN#1 beta
    we2 = _xavier_uniform(ks[2], (Fe, F * F))          # NNConv#2 edge-net Linear(2, 9)
    be2 = jnp.zeros((1, F * F), jnp.float32)
    r2 = _xavier_uniform(ks[3], (F, F))
    b2 = jnp.zeros((1, F), jnp.float32)
    g2 = jnp.ones((1, F), jnp.float32)
    bt2 = jnp.zeros((1, F), jnp.float32)
    wp = _xavier_uniform(ks[4], (2 * F, 1))            # predictor Linear(6, 1)
    bp = jnp.full((1, 1), 0.01, jnp.float32)           # init_weights: bias = 0.01
    return [we1, be1, r1, b1, g1, bt1, we2, be2, r2, b2, g2, bt2, wp, bp]


if __name__ == "__main__":
    key = jax.random.PRNGKey(0)
    k_x, k_ea, k_src, k_dst, k_p = jax.random.split(key, 5)

    N, E, G = 12, 24, 2                      # nodes, edges, graphs in the batch
    x = jax.random.normal(k_x, (N, NODE_DIM), jnp.float32)            # batch.x
    edge_attr = jax.random.normal(k_ea, (E, EDGE_DIM), jnp.float32)   # batch.edge_attr
    src = jax.random.randint(k_src, (E,), 0, N)
    dst = jax.random.randint(k_dst, (E,), 0, N)
    edge_index = jnp.stack([src, dst], axis=0)                        # batch.edge_index
    batch_vector = jnp.concatenate(
        [jnp.zeros(N // 2, jnp.int32), jnp.ones(N - N // 2, jnp.int32)])  # batch.batch

    params = init_params(k_p)

    out = base_gnn_forward(x, edge_index, edge_attr, batch_vector, G, params)
    out = jax.block_until_ready(out)

    ref = _reference_forward(x, edge_index, edge_attr, batch_vector, G, params)
    assert out.shape == (G, 1)
    assert bool(jnp.all(jnp.isfinite(out)))
    # bf16 MXU operands (hT / msgT / pooled h rounded to bf16, f32 accumulate)
    # -> relax tolerance from 1e-4 to ~1e-2-level as advised in the review.
    assert bool(jnp.allclose(out, ref, atol=3e-2, rtol=3e-2))
    print("KERNEL_OK")
</pallas_src>

<mosaic_0001>
module attributes {stable_mosaic.version = 11 : i64} {
  func.func @gnn_kernel(%arg0: memref<3x128xf32, #tpu.memory_space<vmem>>, %arg1: memref<2x128xf32, #tpu.memory_space<vmem>>, %arg2: memref<128x128xbf16, #tpu.memory_space<vmem>>, %arg3: memref<128x128xbf16, #tpu.memory_space<vmem>>, %arg4: memref<128x128xbf16, #tpu.memory_space<vmem>>, %arg5: memref<8x128xf32, #tpu.memory_space<vmem>>, %arg6: memref<16x16xf32, #tpu.memory_space<vmem>>, %arg7: memref<1x128xf32, #tpu.memory_space<vmem>>) attributes {dimension_semantics = [], scalar_prefetch = 0 : i64, scratch_operands = 0 : i64, tpu.core_type = #tpu.core_type<tc>} {
    %c0 = arith.constant 0 : index
    %c0_0 = arith.constant 0 : index
    %0 = vector.load %arg0[%c0, %c0_0] : memref<3x128xf32, #tpu.memory_space<vmem>>, vector<3x128xf32>
    %c0_1 = arith.constant 0 : index
    %c0_2 = arith.constant 0 : index
    %1 = vector.load %arg1[%c0_1, %c0_2] : memref<2x128xf32, #tpu.memory_space<vmem>>, vector<2x128xf32>
    %c0_3 = arith.constant 0 : index
    %c0_4 = arith.constant 0 : index
    %2 = vector.load %arg2[%c0_3, %c0_4] : memref<128x128xbf16, #tpu.memory_space<vmem>>, vector<128x128xbf16>
    %c0_5 = arith.constant 0 : index
    %c0_6 = arith.constant 0 : index
    %3 = vector.load %arg3[%c0_5, %c0_6] : memref<128x128xbf16, #tpu.memory_space<vmem>>, vector<128x128xbf16>
    %c0_7 = arith.constant 0 : index
    %c0_8 = arith.constant 0 : index
    %4 = vector.load %arg4[%c0_7, %c0_8] : memref<128x128xbf16, #tpu.memory_space<vmem>>, vector<128x128xbf16>
    %c0_9 = arith.constant 0 : index
    %c0_10 = arith.constant 0 : index
    %5 = vector.load %arg5[%c0_9, %c0_10] : memref<8x128xf32, #tpu.memory_space<vmem>>, vector<8x128xf32>
    %6 = vector.extract_strided_slice %5 {offsets = [0, 0], sizes = [1, 128], strides = [1, 1]} : vector<8x128xf32> to vector<1x128xf32>
    %7 = vector.extract_strided_slice %5 {offsets = [1, 0], sizes = [1, 128], strides = [1, 1]} : vector<8x128xf32> to vector<1x128xf32>
    %8 = vector.extract_strided_slice %5 {offsets = [2, 0], sizes = [1, 128], strides = [1, 1]} : vector<8x128xf32> to vector<1x128xf32>
    %c0_11 = arith.constant 0 : index
    %c0_12 = arith.constant 0 : index
    %9 = vector.load %arg6[%c0_11, %c0_12] : memref<16x16xf32, #tpu.memory_space<vmem>>, vector<16x16xf32>
    %10 = vector.extract_strided_slice %9 {offsets = [0, 0], sizes = [9, 2], strides = [1, 1]} : vector<16x16xf32> to vector<9x2xf32>
    %11 = vector.extract_strided_slice %9 {offsets = [0, 2], sizes = [9, 1], strides = [1, 1]} : vector<16x16xf32> to vector<9x1xf32>
    %12 = vector.extract_strided_slice %9 {offsets = [0, 3], sizes = [9, 2], strides = [1, 1]} : vector<16x16xf32> to vector<9x2xf32>
    %13 = vector.extract_strided_slice %9 {offsets = [0, 5], sizes = [9, 1], strides = [1, 1]} : vector<16x16xf32> to vector<9x1xf32>
    %14 = vector.extract_strided_slice %9 {offsets = [0, 6], sizes = [3, 3], strides = [1, 1]} : vector<16x16xf32> to vector<3x3xf32>
    %15 = vector.extract_strided_slice %9 {offsets = [0, 9], sizes = [3, 1], strides = [1, 1]} : vector<16x16xf32> to vector<3x1xf32>
    %16 = vector.extract_strided_slice %9 {offsets = [0, 10], sizes = [3, 1], strides = [1, 1]} : vector<16x16xf32> to vector<3x1xf32>
    %17 = vector.extract_strided_slice %9 {offsets = [0, 11], sizes = [3, 1], strides = [1, 1]} : vector<16x16xf32> to vector<3x1xf32>
    %18 = vector.extract_strided_slice %9 {offsets = [3, 6], sizes = [3, 3], strides = [1, 1]} : vector<16x16xf32> to vector<3x3xf32>
    %19 = vector.extract_strided_slice %9 {offsets = [3, 9], sizes = [3, 1], strides = [1, 1]} : vector<16x16xf32> to vector<3x1xf32>
    %20 = vector.extract_strided_slice %9 {offsets = [3, 10], sizes = [3, 1], strides = [1, 1]} : vector<16x16xf32> to vector<3x1xf32>
    %21 = vector.extract_strided_slice %9 {offsets = [3, 11], sizes = [3, 1], strides = [1, 1]} : vector<16x16xf32> to vector<3x1xf32>
    %22 = vector.extract_strided_slice %9 {offsets = [6, 6], sizes = [1, 6], strides = [1, 1]} : vector<16x16xf32> to vector<1x6xf32>
    %23 = vector.extract_strided_slice %9 {offsets = [7, 6], sizes = [1, 1], strides = [1, 1]} : vector<16x16xf32> to vector<1x1xf32>
    %cst = arith.constant 0.000000e+00 : f32
    %24 = vector.broadcast %cst : f32 to vector<9x128xf32>
    %25 = vector.extract_strided_slice %10 {offsets = [0, 0], sizes = [9, 1], strides = [1, 1]} : vector<9x2xf32> to vector<9x1xf32>
    %26 = vector.extract_strided_slice %1 {offsets = [0, 0], sizes = [1, 128], strides = [1, 1]} : vector<2x128xf32> to vector<1x128xf32>
    %27 = vector.broadcast %25 : vector<9x1xf32> to vector<9x128xf32>
    %28 = vector.broadcast %26 : vector<1x128xf32> to vector<9x128xf32>
    %29 = arith.mulf %27, %28 : vector<9x128xf32>
    %30 = arith.addf %24, %29 : vector<9x128xf32>
    %31 = vector.extract_strided_slice %10 {offsets = [0, 1], sizes = [9, 1], strides = [1, 1]} : vector<9x2xf32> to vector<9x1xf32>
    %32 = vector.extract_strided_slice %1 {offsets = [1, 0], sizes = [1, 128], strides = [1, 1]} : vector<2x128xf32> to vector<1x128xf32>
    %33 = vector.broadcast %31 : vector<9x1xf32> to vector<9x128xf32>
    %34 = vector.broadcast %32 : vector<1x128xf32> to vector<9x128xf32>
    %35 = arith.mulf %33, %34 : vector<9x128xf32>
    %36 = arith.addf %30, %35 : vector<9x128xf32>
    %37 = vector.broadcast %11 : vector<9x1xf32> to vector<9x128xf32>
    %38 = arith.addf %36, %37 : vector<9x128xf32>
    %39 = math.tanh %38 : vector<9x128xf32>
    %40 = arith.truncf %0 : vector<3x128xf32> to vector<3x128xbf16>
    %cst_13 = arith.constant dense<0.000000e+00> : vector<3x128xf32>
    %41 = tpu.matmul %40, %2, %cst_13 {dimension_numbers = #tpu.dot_dimension_numbers<[1], [0], [0], [1], [0, 0, 1, 1], [], []>} : vector<3x128xbf16>, vector<128x128xbf16>, vector<3x128xf32> -> vector<3x128xf32>
    %cst_14 = arith.constant 0.000000e+00 : f32
    %42 = vector.broadcast %cst_14 : f32 to vector<3x128xf32>
    %43 = vector.extract_strided_slice %41 {offsets = [0, 0], sizes = [1, 128], strides = [1, 1]} : vector<3x128xf32> to vector<1x128xf32>
    %44 = vector.extract_strided_slice %39 {offsets = [0, 0], sizes = [3, 128], strides = [1, 1]} : vector<9x128xf32> to vector<3x128xf32>
    %45 = vector.broadcast %43 : vector<1x128xf32> to vector<3x128xf32>
    %46 = arith.mulf %45, %44 : vector<3x128xf32>
    %47 = arith.addf %42, %46 : vector<3x128xf32>
    %48 = vector.extract_strided_slice %41 {offsets = [1, 0], sizes = [1, 128], strides = [1, 1]} : vector<3x128xf32> to vector<1x128xf32>
    %49 = vector.extract_strided_slice %39 {offsets = [3, 0], sizes = [3, 128], strides = [1, 1]} : vector<9x128xf32> to vector<3x128xf32>
    %50 = vector.broadcast %48 : vector<1x128xf32> to vector<3x128xf32>
    %51 = arith.mulf %50, %49 : vector<3x128xf32>
    %52 = arith.addf %47, %51 : vector<3x128xf32>
    %53 = vector.extract_strided_slice %41 {offsets = [2, 0], sizes = [1, 128], strides = [1, 1]} : vector<3x128xf32> to vector<1x128xf32>
    %54 = vector.extract_strided_slice %39 {offsets = [6, 0], sizes = [3, 128], strides = [1, 1]} : vector<9x128xf32> to vector<3x128xf32>
    %55 = vector.broadcast %53 : vector<1x128xf32> to vector<3x128xf32>
    %56 = arith.mulf %55, %54 : vector<3x128xf32>
    %57 = arith.addf %52, %56 : vector<3x128xf32>
    %58 = arith.truncf %57 : vector<3x128xf32> to vector<3x128xbf16>
    %cst_15 = arith.constant dense<0.000000e+00> : vector<3x128xf32>
    %59 = tpu.matmul %58, %3, %cst_15 {dimension_numbers = #tpu.dot_dimension_numbers<[1], [0], [0], [1], [0, 0, 1, 1], [], []>} : vector<3x128xbf16>, vector<128x128xbf16>, vector<3x128xf32> -> vector<3x128xf32>
    %60 = vector.broadcast %6 : vector<1x128xf32> to vector<3x128xf32>
    %61 = arith.mulf %59, %60 : vector<3x128xf32>
    %cst_16 = arith.constant 0.000000e+00 : f32
    %62 = vector.broadcast %cst_16 : f32 to vector<3x128xf32>
    %63 = vector.extract_strided_slice %14 {offsets = [0, 0], sizes = [3, 1], strides = [1, 1]} : vector<3x3xf32> to vector<3x1xf32>
    %64 = vector.extract_strided_slice %0 {offsets = [0, 0], sizes = [1, 128], strides = [1, 1]} : vector<3x128xf32> to vector<1x128xf32>
    %65 = vector.broadcast %63 : vector<3x1xf32> to vector<3x128xf32>
    %66 = vector.broadcast %64 : vector<1x128xf32> to vector<3x128xf32>
    %67 = arith.mulf %65, %66 : vector<3x128xf32>
    %68 = arith.addf %62, %67 : vector<3x128xf32>
    %69 = vector.extract_strided_slice %14 {offsets = [0, 1], sizes = [3, 1], strides = [1, 1]} : vector<3x3xf32> to vector<3x1xf32>
    %70 = vector.extract_strided_slice %0 {offsets = [1, 0], sizes = [1, 128], strides = [1, 1]} : vector<3x128xf32> to vector<1x128xf32>
    %71 = vector.broadcast %69 : vector<3x1xf32> to vector<3x128xf32>
    %72 = vector.broadcast %70 : vector<1x128xf32> to vector<3x128xf32>
    %73 = arith.mulf %71, %72 : vector<3x128xf32>
    %74 = arith.addf %68, %73 : vector<3x128xf32>
    %75 = vector.extract_strided_slice %14 {offsets = [0, 2], sizes = [3, 1], strides = [1, 1]} : vector<3x3xf32> to vector<3x1xf32>
    %76 = vector.extract_strided_slice %0 {offsets = [2, 0], sizes = [1, 128], strides = [1, 1]} : vector<3x128xf32> to vector<1x128xf32>
    %77 = vector.broadcast %75 : vector<3x1xf32> to vector<3x128xf32>
    %78 = vector.broadcast %76 : vector<1x128xf32> to vector<3x128xf32>
    %79 = arith.mulf %77, %78 : vector<3x128xf32>
    %80 = arith.addf %74, %79 : vector<3x128xf32>
    %81 = arith.addf %61, %80 : vector<3x128xf32>
    %82 = vector.broadcast %15 : vector<3x1xf32> to vector<3x128xf32>
    %83 = arith.addf %81, %82 : vector<3x128xf32>
    %84 = vector.broadcast %8 : vector<1x128xf32> to vector<3x128xf32>
    %85 = arith.mulf %83, %84 : vector<3x128xf32>
    %cst_17 = arith.constant dense<0.000000e+00> : vector<3xf32>
    %86 = vector.multi_reduction <add>, %85, %cst_17 [1] : vector<3x128xf32> to vector<3xf32>
    %87 = vector.shape_cast %86 : vector<3xf32> to vector<3x1xf32>
    %cst_18 = arith.constant 0.0833333358 : f32
    %88 = vector.broadcast %cst_18 : f32 to vector<3x1xf32>
    %89 = arith.mulf %87, %88 : vector<3x1xf32>
    %90 = vector.broadcast %89 : vector<3x1xf32> to vector<3x128xf32>
    %91 = arith.subf %83, %90 : vector<3x128xf32>
    %92 = vector.broadcast %8 : vector<1x128xf32> to vector<3x128xf32>
    %93 = arith.mulf %91, %92 : vector<3x128xf32>
    %94 = arith.mulf %93, %93 : vector<3x128xf32>
    %cst_19 = arith.constant dense<0.000000e+00> : vector<3xf32>
    %95 = vector.multi_reduction <add>, %94, %cst_19 [1] : vector<3x128xf32> to vector<3xf32>
    %96 = vector.shape_cast %95 : vector<3xf32> to vector<3x1xf32>
    %cst_20 = arith.constant 0.0833333358 : f32
    %97 = vector.broadcast %cst_20 : f32 to vector<3x1xf32>
    %98 = arith.mulf %96, %97 : vector<3x1xf32>
    %99 = vector.broadcast %89 : vector<3x1xf32> to vector<3x128xf32>
    %100 = arith.subf %83, %99 : vector<3x128xf32>
    %cst_21 = arith.constant 9.99999974E-6 : f32
    %101 = vector.broadcast %cst_21 : f32 to vector<3x1xf32>
    %102 = arith.addf %98, %101 : vector<3x1xf32>
    %103 = math.rsqrt %102 : vector<3x1xf32>
    %104 = vector.broadcast %103 : vector<3x1xf32> to vector<3x128xf32>
    %105 = arith.mulf %100, %104 : vector<3x128xf32>
    %106 = vector.broadcast %16 : vector<3x1xf32> to vector<3x128xf32>
    %107 = arith.mulf %105, %106 : vector<3x128xf32>
    %108 = vector.broadcast %17 : vector<3x1xf32> to vector<3x128xf32>
    %109 = arith.addf %107, %108 : vector<3x128xf32>
    %cst_22 = arith.constant 0.000000e+00 : f32
    %110 = vector.broadcast %cst_22 : f32 to vector<9x128xf32>
    %111 = vector.extract_strided_slice %12 {offsets = [0, 0], sizes = [9, 1], strides = [1, 1]} : vector<9x2xf32> to vector<9x1xf32>
    %112 = vector.extract_strided_slice %1 {offsets = [0, 0], sizes = [1, 128], strides = [1, 1]} : vector<2x128xf32> to vector<1x128xf32>
    %113 = vector.broadcast %111 : vector<9x1xf32> to vector<9x128xf32>
    %114 = vector.broadcast %112 : vector<1x128xf32> to vector<9x128xf32>
    %115 = arith.mulf %113, %114 : vector<9x128xf32>
    %116 = arith.addf %110, %115 : vector<9x128xf32>
    %117 = vector.extract_strided_slice %12 {offsets = [0, 1], sizes = [9, 1], strides = [1, 1]} : vector<9x2xf32> to vector<9x1xf32>
    %118 = vector.extract_strided_slice %1 {offsets = [1, 0], sizes = [1, 128], strides = [1, 1]} : vector<2x128xf32> to vector<1x128xf32>
    %119 = vector.broadcast %117 : vector<9x1xf32> to vector<9x128xf32>
    %120 = vector.broadcast %118 : vector<1x128xf32> to vector<9x128xf32>
    %121 = arith.mulf %119, %120 : vector<9x128xf32>
    %122 = arith.addf %116, %121 : vector<9x128xf32>
    %123 = vector.broadcast %13 : vector<9x1xf32> to vector<9x128xf32>
    %124 = arith.addf %122, %123 : vector<9x128xf32>
    %cst_23 = arith.constant 0.000000e+00 : f32
    %125 = vector.broadcast %cst_23 : f32 to vector<9x128xf32>
    %126 = arith.maximumf %124, %125 : vector<9x128xf32>
    %127 = arith.truncf %109 : vector<3x128xf32> to vector<3x128xbf16>
    %cst_24 = arith.constant dense<0.000000e+00> : vector<3x128xf32>
    %128 = tpu.matmul %127, %2, %cst_24 {dimension_numbers = #tpu.dot_dimension_numbers<[1], [0], [0], [1], [0, 0, 1, 1], [], []>} : vector<3x128xbf16>, vector<128x128xbf16>, vector<3x128xf32> -> vector<3x128xf32>
    %cst_25 = arith.constant 0.000000e+00 : f32
    %129 = vector.broadcast %cst_25 : f32 to vector<3x128xf32>
    %130 = vector.extract_strided_slice %128 {offsets = [0, 0], sizes = [1, 128], strides = [1, 1]} : vector<3x128xf32> to vector<1x128xf32>
    %131 = vector.extract_strided_slice %126 {offsets = [0, 0], sizes = [3, 128], strides = [1, 1]} : vector<9x128xf32> to vector<3x128xf32>
    %132 = vector.broadcast %130 : vector<1x128xf32> to vector<3x128xf32>
    %133 = arith.mulf %132, %131 : vector<3x128xf32>
    %134 = arith.addf %129, %133 : vector<3x128xf32>
    %135 = vector.extract_strided_slice %128 {offsets = [1, 0], sizes = [1, 128], strides = [1, 1]} : vector<3x128xf32> to vector<1x128xf32>
    %136 = vector.extract_strided_slice %126 {offsets = [3, 0], sizes = [3, 128], strides = [1, 1]} : vector<9x128xf32> to vector<3x128xf32>
    %137 = vector.broadcast %135 : vector<1x128xf32> to vector<3x128xf32>
    %138 = arith.mulf %137, %136 : vector<3x128xf32>
    %139 = arith.addf %134, %138 : vector<3x128xf32>
    %140 = vector.extract_strided_slice %128 {offsets = [2, 0], sizes = [1, 128], strides = [1, 1]} : vector<3x128xf32> to vector<1x128xf32>
    %141 = vector.extract_strided_slice %126 {offsets = [6, 0], sizes = [3, 128], strides = [1, 1]} : vector<9x128xf32> to vector<3x128xf32>
    %142 = vector.broadcast %140 : vector<1x128xf32> to vector<3x128xf32>
    %143 = arith.mulf %142, %141 : vector<3x128xf32>
    %144 = arith.addf %139, %143 : vector<3x128xf32>
    %145 = arith.truncf %144 : vector<3x128xf32> to vector<3x128xbf16>
    %cst_26 = arith.constant dense<0.000000e+00> : vector<3x128xf32>
    %146 = tpu.matmul %145, %3, %cst_26 {dimension_numbers = #tpu.dot_dimension_numbers<[1], [0], [0], [1], [0, 0, 1, 1], [], []>} : vector<3x128xbf16>, vector<128x128xbf16>, vector<3x128xf32> -> vector<3x128xf32>
    %147 = vector.broadcast %6 : vector<1x128xf32> to vector<3x128xf32>
    %148 = arith.mulf %146, %147 : vector<3x128xf32>
    %cst_27 = arith.constant 0.000000e+00 : f32
    %149 = vector.broadcast %cst_27 : f32 to vector<3x128xf32>
    %150 = vector.extract_strided_slice %18 {offsets = [0, 0], sizes = [3, 1], strides = [1, 1]} : vector<3x3xf32> to vector<3x1xf32>
    %151 = vector.extract_strided_slice %109 {offsets = [0, 0], sizes = [1, 128], strides = [1, 1]} : vector<3x128xf32> to vector<1x128xf32>
    %152 = vector.broadcast %150 : vector<3x1xf32> to vector<3x128xf32>
    %153 = vector.broadcast %151 : vector<1x128xf32> to vector<3x128xf32>
    %154 = arith.mulf %152, %153 : vector<3x128xf32>
    %155 = arith.addf %149, %154 : vector<3x128xf32>
    %156 = vector.extract_strided_slice %18 {offsets = [0, 1], sizes = [3, 1], strides = [1, 1]} : vector<3x3xf32> to vector<3x1xf32>
    %157 = vector.extract_strided_slice %109 {offsets = [1, 0], sizes = [1, 128], strides = [1, 1]} : vector<3x128xf32> to vector<1x128xf32>
    %158 = vector.broadcast %156 : vector<3x1xf32> to vector<3x128xf32>
    %159 = vector.broadcast %157 : vector<1x128xf32> to vector<3x128xf32>
    %160 = arith.mulf %158, %159 : vector<3x128xf32>
    %161 = arith.addf %155, %160 : vector<3x128xf32>
    %162 = vector.extract_strided_slice %18 {offsets = [0, 2], sizes = [3, 1], strides = [1, 1]} : vector<3x3xf32> to vector<3x1xf32>
    %163 = vector.extract_strided_slice %109 {offsets = [2, 0], sizes = [1, 128], strides = [1, 1]} : vector<3x128xf32> to vector<1x128xf32>
    %164 = vector.broadcast %162 : vector<3x1xf32> to vector<3x128xf32>
    %165 = vector.broadcast %163 : vector<1x128xf32> to vector<3x128xf32>
    %166 = arith.mulf %164, %165 : vector<3x128xf32>
    %167 = arith.addf %161, %166 : vector<3x128xf32>
    %168 = arith.addf %148, %167 : vector<3x128xf32>
    %169 = vector.broadcast %19 : vector<3x1xf32> to vector<3x128xf32>
    %170 = arith.addf %168, %169 : vector<3x128xf32>
    %171 = vector.broadcast %8 : vector<1x128xf32> to vector<3x128xf32>
    %172 = arith.mulf %170, %171 : vector<3x128xf32>
    %cst_28 = arith.constant dense<0.000000e+00> : vector<3xf32>
    %173 = vector.multi_reduction <add>, %172, %cst_28 [1] : vector<3x128xf32> to vector<3xf32>
    %174 = vector.shape_cast %173 : vector<3xf32> to vector<3x1xf32>
    %cst_29 = arith.constant 0.0833333358 : f32
    %175 = vector.broadcast %cst_29 : f32 to vector<3x1xf32>
    %176 = arith.mulf %174, %175 : vector<3x1xf32>
    %177 = vector.broadcast %176 : vector<3x1xf32> to vector<3x128xf32>
    %178 = arith.subf %170, %177 : vector<3x128xf32>
    %179 = vector.broadcast %8 : vector<1x128xf32> to vector<3x128xf32>
    %180 = arith.mulf %178, %179 : vector<3x128xf32>
    %181 = arith.mulf %180, %180 : vector<3x128xf32>
    %cst_30 = arith.constant dense<0.000000e+00> : vector<3xf32>
    %182 = vector.multi_reduction <add>, %181, %cst_30 [1] : vector<3x128xf32> to vector<3xf32>
    %183 = vector.shape_cast %182 : vector<3xf32> to vector<3x1xf32>
    %cst_31 = arith.constant 0.0833333358 : f32
    %184 = vector.broadcast %cst_31 : f32 to vector<3x1xf32>
    %185 = arith.mulf %183, %184 : vector<3x1xf32>
    %186 = vector.broadcast %176 : vector<3x1xf32> to vector<3x128xf32>
    %187 = arith.subf %170, %186 : vector<3x128xf32>
    %cst_32 = arith.constant 9.99999974E-6 : f32
    %188 = vector.broadcast %cst_32 : f32 to vector<3x1xf32>
    %189 = arith.addf %185, %188 : vector<3x1xf32>
    %190 = math.rsqrt %189 : vector<3x1xf32>
    %191 = vector.broadcast %190 : vector<3x1xf32> to vector<3x128xf32>
    %192 = arith.mulf %187, %191 : vector<3x128xf32>
    %193 = vector.broadcast %20 : vector<3x1xf32> to vector<3x128xf32>
    %194 = arith.mulf %192, %193 : vector<3x128xf32>
    %195 = vector.broadcast %21 : vector<3x1xf32> to vector<3x128xf32>
    %196 = arith.addf %194, %195 : vector<3x128xf32>
    %197 = arith.truncf %196 : vector<3x128xf32> to vector<3x128xbf16>
    %cst_33 = arith.constant dense<0.000000e+00> : vector<3x128xf32>
    %198 = tpu.matmul %197, %4, %cst_33 {dimension_numbers = #tpu.dot_dimension_numbers<[1], [0], [0], [1], [0, 0, 1, 1], [], []>} : vector<3x128xbf16>, vector<128x128xbf16>, vector<3x128xf32> -> vector<3x128xf32>
    %199 = vector.broadcast %7 : vector<1x128xf32> to vector<3x128xf32>
    %200 = arith.mulf %198, %199 : vector<3x128xf32>
    %cst_34 = arith.constant 0.000000e+00 : f32
    %201 = vector.broadcast %cst_34 : f32 to vector<1x128xf32>
    %202 = vector.extract_strided_slice %22 {offsets = [0, 0], sizes = [1, 1], strides = [1, 1]} : vector<1x6xf32> to vector<1x1xf32>
    %203 = vector.extract_strided_slice %198 {offsets = [0, 0], sizes = [1, 128], strides = [1, 1]} : vector<3x128xf32> to vector<1x128xf32>
    %204 = vector.broadcast %202 : vector<1x1xf32> to vector<1x128xf32>
    %205 = arith.mulf %204, %203 : vector<1x128xf32>
    %206 = arith.addf %201, %205 : vector<1x128xf32>
    %207 = vector.extract_strided_slice %22 {offsets = [0, 3], sizes = [1, 1], strides = [1, 1]} : vector<1x6xf32> to vector<1x1xf32>
    %208 = vector.extract_strided_slice %200 {offsets = [0, 0], sizes = [1, 128], strides = [1, 1]} : vector<3x128xf32> to vector<1x128xf32>
    %209 = vector.broadcast %207 : vector<1x1xf32> to vector<1x128xf32>
    %210 = arith.mulf %209, %208 : vector<1x128xf32>
    %211 = arith.addf %206, %210 : vector<1x128xf32>
    %212 = vector.extract_strided_slice %22 {offsets = [0, 1], sizes = [1, 1], strides = [1, 1]} : vector<1x6xf32> to vector<1x1xf32>
    %213 = vector.extract_strided_slice %198 {offsets = [1, 0], sizes = [1, 128], strides = [1, 1]} : vector<3x128xf32> to vector<1x128xf32>
    %214 = vector.broadcast %212 : vector<1x1xf32> to vector<1x128xf32>
    %215 = arith.mulf %214, %213 : vector<1x128xf32>
    %216 = arith.addf %211, %215 : vector<1x128xf32>
    %217 = vector.extract_strided_slice %22 {offsets = [0, 4], sizes = [1, 1], strides = [1, 1]} : vector<1x6xf32> to vector<1x1xf32>
    %218 = vector.extract_strided_slice %200 {offsets = [1, 0], sizes = [1, 128], strides = [1, 1]} : vector<3x128xf32> to vector<1x128xf32>
    %219 = vector.broadcast %217 : vector<1x1xf32> to vector<1x128xf32>
    %220 = arith.mulf %219, %218 : vector<1x128xf32>
    %221 = arith.addf %216, %220 : vector<1x128xf32>
    %222 = vector.extract_strided_slice %22 {offsets = [0, 2], sizes = [1, 1], strides = [1, 1]} : vector<1x6xf32> to vector<1x1xf32>
    %223 = vector.extract_strided_slice %198 {offsets = [2, 0], sizes = [1, 128], strides = [1, 1]} : vector<3x128xf32> to vector<1x128xf32>
    %224 = vector.broadcast %222 : vector<1x1xf32> to vector<1x128xf32>
    %225 = arith.mulf %224, %223 : vector<1x128xf32>
    %226 = arith.addf %221, %225 : vector<1x128xf32>
    %227 = vector.extract_strided_slice %22 {offsets = [0, 5], sizes = [1, 1], strides = [1, 1]} : vector<1x6xf32> to vector<1x1xf32>
    %228 = vector.extract_strided_slice %200 {offsets = [2, 0], sizes = [1, 128], strides = [1, 1]} : vector<3x128xf32> to vector<1x128xf32>
    %229 = vector.broadcast %227 : vector<1x1xf32> to vector<1x128xf32>
    %230 = arith.mulf %229, %228 : vector<1x128xf32>
    %231 = arith.addf %226, %230 : vector<1x128xf32>
    %232 = vector.broadcast %23 : vector<1x1xf32> to vector<1x128xf32>
    %233 = arith.addf %231, %232 : vector<1x128xf32>
    %cst_35 = arith.constant 0.000000e+00 : f32
    %234 = vector.broadcast %cst_35 : f32 to vector<1x128xf32>
    %235 = arith.cmpf ogt, %233, %234 : vector<1x128xf32>
    %cst_36 = arith.constant 0.000000e+00 : f32
    %236 = vector.broadcast %cst_36 : f32 to vector<1x128xf32>
    %237 = arith.minimumf %233, %236 : vector<1x128xf32>
    %238 = math.exp %237 : vector<1x128xf32>
    %cst_37 = arith.constant 1.000000e+00 : f32
    %239 = vector.broadcast %cst_37 : f32 to vector<1x128xf32>
    %240 = arith.subf %238, %239 : vector<1x128xf32>
    %241 = arith.select %235, %233, %240 : vector<1x128xi1>, vector<1x128xf32>
    %c0_38 = arith.constant 0 : index
    %c0_39 = arith.constant 0 : index
    %242 = vector.load %arg7[%c0_38, %c0_39] : memref<1x128xf32, #tpu.memory_space<vmem>>, vector<1x128xf32>
    tpu.vector_store %arg7[%c0_38, %c0_39], %241 {strides = array<i32>} : memref<1x128xf32, #tpu.memory_space<vmem>>, vector<1x128xf32>,
    return
  }
}

</mosaic_0001>

<llo_original>
// kernel: tpu_custom_call.1
$region0: #{tpu_custom_call.1}
  #allocation0 [shape = 'u32[]', space=smem, size = 0x4, offset = 0x4, fixed_abs, tag = 'smem constant byte address 0x4 - core index']
  #allocation1 [shape = 'u32[144,128]{1,0:T(1,128)}', space=vmem, size = 0x12000, scoped, tag = 'internal scratch']
  %s0 = inlined_call_operand.hbm [shape: f32[3,128], index: 0, kind: input, shape index: {}]
  %s1 = inlined_call_operand.hbm [shape: f32[2,128], index: 1, kind: input, shape index: {}]
  %s2 = inlined_call_operand.hbm [shape: bf16[128,128], index: 2, kind: input, shape index: {}]
  %s3 = inlined_call_operand.hbm [shape: bf16[128,128], index: 3, kind: input, shape index: {}]
  %s4 = inlined_call_operand.hbm [shape: bf16[128,128], index: 4, kind: input, shape index: {}]
  %s5 = inlined_call_operand.vmem [shape: f32[8,128], index: 5, kind: input, shape index: {}]
  %s6 = inlined_call_operand.hbm [shape: f32[16,16], index: 6, kind: input, shape index: {}]
  %s7 = inlined_call_operand.hbm [shape: f32[1,128], index: 7, kind: output, shape index: {}]
  %s8 = sld [smem:[#allocation0]]
  $region62: #{tpu_custom_call.1} parent=0
    _
  %s10 = ssub.s32 1, %s8
  %s11 = scalar_select 0, %s10, %s8
  $region1: #{tpu_custom_call.1} parent=0
    #allocation2 [shape = 'u8[2048]{0}', space=vmem, size = 0x800, scoped, tag = 'input window, operand 0, single buffered']
    #allocation3 [shape = 's32[1]{0}', space=sflag, size = 0x4, scoped, tag = 'scoped memory for tpu_custom_call.1']
    #allocation4 [shape = 's32[1]{0}', space=sflag, size = 0x4, scoped, tag = 'scoped memory for tpu_custom_call.1']
    #allocation5 [shape = 'u8[1024]{0}', space=vmem, size = 0x400, scoped, tag = 'input window, operand 1, single buffered']
    #allocation6 [shape = 's32[1]{0}', space=sflag, size = 0x4, scoped, tag = 'scoped memory for tpu_custom_call.1']
    #allocation7 [shape = 'u8[32768]{0}', space=vmem, size = 0x8000, scoped, tag = 'input window, operand 2, single buffered']
    #allocation8 [shape = 'u8[32768]{0}', space=vmem, size = 0x8000, scoped, tag = 'input window, operand 3, single buffered']
    #allocation9 [shape = 's32[1]{0}', space=sflag, size = 0x4, scoped, tag = 'scoped memory for tpu_custom_call.1']
    #allocation10 [shape = 'u8[32768]{0}', space=vmem, size = 0x8000, scoped, tag = 'input window, operand 4, single buffered']
    #allocation11 [shape = 'u8[8192]{0}', space=vmem, size = 0x2000, scoped, tag = 'input window, operand 6, single buffered']
    #allocation12 [shape = 's32[1]{0}', space=sflag, size = 0x4, scoped, tag = 'scoped memory for tpu_custom_call.1']
    #allocation13 [shape = 'u8[512]{0}', space=vmem, size = 0x400, scoped, tag = 'output window, operand 0, single buffered']
    %12 = vsyncpa [#allocation3], 0
    %13 = vsyncpa [#allocation6], 0
    %14 = vsyncpa [#allocation9], 0
    %15 = vsyncpa [#allocation12], 0
    %16 = vsyncpa [#allocation4], 0
    // Predicated region
    $region2: #{tpu_custom_call.1} parent=1 // pred_check
      _
    $region3: #{tpu_custom_call.1} parent=1 // pred_check_branch
      %18 = sbr.rel (0) target = $region5
    $region4: #{tpu_custom_call.1} parent=1 // pred_region
      %s20 = ssub.s32 64, 64
      %21 = vsyncadd [#allocation3], %s20
      %s23 = sshll.u32 [#allocation2], 4
      %s24 = int_to_ptr.vmem [resolvable:$true] %s23
      %26 = dma.hbm_to_vmem [thread:$0]  %s0, 64, %s24, [#allocation3]
    $region5: #{tpu_custom_call.1} parent=1 // pred_fallthru
      _
    // Predicated region
    $region6: #{tpu_custom_call.1} parent=1 // pred_check
      _
    $region7: #{tpu_custom_call.1} parent=1 // pred_check_branch
      %28 = sbr.rel (0) target = $region9
    $region8: #{tpu_custom_call.1} parent=1 // pred_region
      %s30 = ssub.s32 32, 32
      %31 = vsyncadd [#allocation6], %s30
      %s33 = sshll.u32 [#allocation5], 4
      %s34 = int_to_ptr.vmem [resolvable:$true] %s33
      %36 = dma.hbm_to_vmem [thread:$0]  %s1, 32, %s34, [#allocation6]
    $region9: #{tpu_custom_call.1} parent=1 // pred_fallthru
      _
    // Predicated region
    $region10: #{tpu_custom_call.1} parent=1 // pred_check
      _
    $region11: #{tpu_custom_call.1} parent=1 // pred_check_branch
      %38 = sbr.rel (0) target = $region13
    $region12: #{tpu_custom_call.1} parent=1 // pred_region
      %s40 = ssub.s32 1024, 1024
      %41 = vsyncadd [#allocation6], %s40
      %s42 = sshll.u32 [#allocation7], 4
      %s43 = int_to_ptr.vmem [resolvable:$true] %s42
      %48 = dma.hbm_to_vmem [thread:$0]  %s2, 1024, %s43, [#allocation6], 64, 64, 4
    $region13: #{tpu_custom_call.1} parent=1 // pred_fallthru
      _
    // Predicated region
    $region14: #{tpu_custom_call.1} parent=1 // pred_check
      _
    $region15: #{tpu_custom_call.1} parent=1 // pred_check_branch
      %50 = sbr.rel (0) target = $region17
    $region16: #{tpu_custom_call.1} parent=1 // pred_region
      %s52 = ssub.s32 1024, 1024
      %53 = vsyncadd [#allocation9], %s52
      %s54 = sshll.u32 [#allocation8], 4
      %s55 = int_to_ptr.vmem [resolvable:$true] %s54
      %60 = dma.hbm_to_vmem [thread:$0]  %s3, 1024, %s55, [#allocation9], 64, 64, 4
    $region17: #{tpu_custom_call.1} parent=1 // pred_fallthru
      _
    // Predicated region
    $region18: #{tpu_custom_call.1} parent=1 // pred_check
      _
    $region19: #{tpu_custom_call.1} parent=1 // pred_check_branch
      %62 = sbr.rel (0) target = $region21
    $region20: #{tpu_custom_call.1} parent=1 // pred_region
      %s64 = ssub.s32 1024, 1024
      %65 = vsyncadd [#allocation9], %s64
      %s66 = sshll.u32 [#allocation10], 4
      %s67 = int_to_ptr.vmem [resolvable:$true] %s66
      %72 = dma.hbm_to_vmem [thread:$0]  %s4, 1024, %s67, [#allocation9], 64, 64, 4
    $region21: #{tpu_custom_call.1} parent=1 // pred_fallthru
      _
    // Predicated region
    $region22: #{tpu_custom_call.1} parent=1 // pred_check
      _
    $region23: #{tpu_custom_call.1} parent=1 // pred_check_branch
      %74 = sbr.rel (0) target = $region25
    $region24: #{tpu_custom_call.1} parent=1 // pred_region
      _
    $region25: #{tpu_custom_call.1} parent=1 // pred_fallthru
      _
    // Predicated region
    $region26: #{tpu_custom_call.1} parent=1 // pred_check
      _
    $region27: #{tpu_custom_call.1} parent=1 // pred_check_branch
      %76 = sbr.rel (0) target = $region29
    $region28: #{tpu_custom_call.1} parent=1 // pred_region
      %s78 = ssub.s32 256, 256
      %79 = vsyncadd [#allocation12], %s78
      %s80 = sshll.u32 [#allocation11], 4
      %s81 = int_to_ptr.vmem [resolvable:$true] %s80
      %86 = dma.hbm_to_vmem [thread:$0]  %s6, 256, %s81, [#allocation12], 128, 128, 8
    $region29: #{tpu_custom_call.1} parent=1 // pred_fallthru
      _
    // Predicated region
    $region30: #{tpu_custom_call.1} parent=1 // pred_check
      _
    $region31: #{tpu_custom_call.1} parent=1 // pred_check_branch
      %88 = sbr.rel (0) target = $region33
    $region32: #{tpu_custom_call.1} parent=1 // pred_region
      %89 = dma.done [#allocation3], 64
    $region33: #{tpu_custom_call.1} parent=1 // pred_fallthru
      _
    // Predicated region
    $region34: #{tpu_custom_call.1} parent=1 // pred_check
      _
    $region35: #{tpu_custom_call.1} parent=1 // pred_check_branch
      %91 = sbr.rel (0) target = $region37
    $region36: #{tpu_custom_call.1} parent=1 // pred_region
      %92 = dma.done [#allocation6], 32
    $region37: #{tpu_custom_call.1} parent=1 // pred_fallthru
      _
    // Predicated region
    $region38: #{tpu_custom_call.1} parent=1 // pred_check
      _
    $region39: #{tpu_custom_call.1} parent=1 // pred_check_branch
      %94 = sbr.rel (0) target = $region41
    $region40: #{tpu_custom_call.1} parent=1 // pred_region
      %95 = dma.done [#allocation6], 1024
    $region41: #{tpu_custom_call.1} parent=1 // pred_fallthru
      _
    // Predicated region
    $region42: #{tpu_custom_call.1} parent=1 // pred_check
      _
    $region43: #{tpu_custom_call.1} parent=1 // pred_check_branch
      %97 = sbr.rel (0) target = $region45
    $region44: #{tpu_custom_call.1} parent=1 // pred_region
      %98 = dma.done [#allocation9], 1024
    $region45: #{tpu_custom_call.1} parent=1 // pred_fallthru
      _
    // Predicated region
    $region46: #{tpu_custom_call.1} parent=1 // pred_check
      _
    $region47: #{tpu_custom_call.1} parent=1 // pred_check_branch
      %100 = sbr.rel (0) target = $region49
    $region48: #{tpu_custom_call.1} parent=1 // pred_region
      %101 = dma.done [#allocation9], 1024
    $region49: #{tpu_custom_call.1} parent=1 // pred_fallthru
      _
    // Predicated region
    $region50: #{tpu_custom_call.1} parent=1 // pred_check
      _
    $region51: #{tpu_custom_call.1} parent=1 // pred_check_branch
      %103 = sbr.rel (0) target = $region53
    $region52: #{tpu_custom_call.1} parent=1 // pred_region
      %104 = dma.done [#allocation12], 256
    $region53: #{tpu_custom_call.1} parent=1 // pred_fallthru
      _
    %v106 = vld [vmem:[#allocation2] sm:$0x7]
    %v107 = vld [vmem:[#allocation5] sm:$0x3]
    %v108 = vld [vmem:[#allocation7] sm:$0xf]
    %v109 = vld [vmem:[#allocation7 + $0x4] sm:$0xf]
    %v110 = vld [vmem:[#allocation7 + $0x8] sm:$0xf]
    %v111 = vld [vmem:[#allocation7 + $0xc] sm:$0xf]
    %v112 = vld [vmem:[#allocation7 + $0x10] sm:$0xf]
    %v113 = vld [vmem:[#allocation7 + $0x14] sm:$0xf]
    %v114 = vld [vmem:[#allocation7 + $0x18] sm:$0xf]
    %v115 = vld [vmem:[#allocation7 + $0x1c] sm:$0xf]
    %v116 = vld [vmem:[#allocation7 + $0x20] sm:$0xf]
    %v117 = vld [vmem:[#allocation7 + $0x24] sm:$0xf]
    %v118 = vld [vmem:[#allocation7 + $0x28] sm:$0xf]
    %v119 = vld [vmem:[#allocation7 + $0x2c] sm:$0xf]
    %v120 = vld [vmem:[#allocation7 + $0x30] sm:$0xf]
    %v121 = vld [vmem:[#allocation7 + $0x34] sm:$0xf]
    %v122 = vld [vmem:[#allocation7 + $0x38] sm:$0xf]
    %v123 = vld [vmem:[#allocation7 + $0x3c] sm:$0xf]
    %v124 = vld [vmem:[#allocation8] sm:$0xf]
    %v125 = vld [vmem:[#allocation8 + $0x4] sm:$0xf]
    %v126 = vld [vmem:[#allocation8 + $0x8] sm:$0xf]
    %v127 = vld [vmem:[#allocation8 + $0xc] sm:$0xf]
    %v128 = vld [vmem:[#allocation8 + $0x10] sm:$0xf]
    %v129 = vld [vmem:[#allocation8 + $0x14] sm:$0xf]
    %v130 = vld [vmem:[#allocation8 + $0x18] sm:$0xf]
    %v131 = vld [vmem:[#allocation8 + $0x1c] sm:$0xf]
    %v132 = vld [vmem:[#allocation8 + $0x20] sm:$0xf]
    %v133 = vld [vmem:[#allocation8 + $0x24] sm:$0xf]
    %v134 = vld [vmem:[#allocation8 + $0x28] sm:$0xf]
    %v135 = vld [vmem:[#allocation8 + $0x2c] sm:$0xf]
    %v136 = vld [vmem:[#allocation8 + $0x30] sm:$0xf]
    %v137 = vld [vmem:[#allocation8 + $0x34] sm:$0xf]
    %v138 = vld [vmem:[#allocation8 + $0x38] sm:$0xf]
    %v139 = vld [vmem:[#allocation8 + $0x3c] sm:$0xf]
    %v140 = vld [vmem:[#allocation10] sm:$0xf]
    %v141 = vld [vmem:[#allocation10 + $0x4] sm:$0xf]
    %v142 = vld [vmem:[#allocation10 + $0x8] sm:$0xf]
    %v143 = vld [vmem:[#allocation10 + $0xc] sm:$0xf]
    %v144 = vld [vmem:[#allocation10 + $0x10] sm:$0xf]
    %v145 = vld [vmem:[#allocation10 + $0x14] sm:$0xf]
    %v146 = vld [vmem:[#allocation10 + $0x18] sm:$0xf]
    %v147 = vld [vmem:[#allocation10 + $0x1c] sm:$0xf]
    %v148 = vld [vmem:[#allocation10 + $0x20] sm:$0xf]
    %v149 = vld [vmem:[#allocation10 + $0x24] sm:$0xf]
    %v150 = vld [vmem:[#allocation10 + $0x28] sm:$0xf]
    %v151 = vld [vmem:[#allocation10 + $0x2c] sm:$0xf]
    %v152 = vld [vmem:[#allocation10 + $0x30] sm:$0xf]
    %v153 = vld [vmem:[#allocation10 + $0x34] sm:$0xf]
    %v154 = vld [vmem:[#allocation10 + $0x38] sm:$0xf]
    %v155 = vld [vmem:[#allocation10 + $0x3c] sm:$0xf]
    %v156 = vld [vmem:[%s5] sm:$0xff]
    %v157 = vld [vmem:[#allocation11] sm:$0xff]
    %v158 = vld [vmem:[#allocation11 + $0x8] sm:$0xff]
    %160 = vset.pattern.permute.xlu0 0
    %161 = vperm.xlu0 %160, %v157
    %v162 = vpop.permute.xlu0 %161
    %165 = vset.pattern.permute.xlu0 0
    %166 = vperm.xlu0 %165, %v158
    %v167 = vpop.permute.xlu0 %166
    %v169 = vlaneseq
    %v170 = vshrl.u32 %v169, 7
    %v171 = vsub.s32 0, %v170
    %v172 = vrot.slane %v107, %v171
    %v173 = vmul.f32 %v162, %v172
    %v174 = vmul.f32 %v167, %v172
    %v175 = vadd.f32 %v173, 0.0
    %v176 = vadd.f32 %v174, 0.0
    %177 = vset.pattern.permute.xlu0 1
    %178 = vperm.xlu0 %177, %v157
    %v179 = vpop.permute.xlu0 %178
    %181 = vset.pattern.permute.xlu0 1
    %182 = vperm.xlu0 %181, %v158
    %v183 = vpop.permute.xlu0 %182
    %v185 = vlaneseq
    %v186 = vshrl.u32 %v185, 7
    %v187 = vsub.s32 1, %v186
    %v188 = vrot.slane %v107, %v187
    %v189 = vmul.f32 %v179, %v188
    %v190 = vmul.f32 %v183, %v188
    %v191 = vadd.f32 %v175, %v189
    %v192 = vadd.f32 %v176, %v190
    %193 = vset.pattern.permute.xlu0 2
    %194 = vperm.xlu0 %193, %v157
    %v195 = vpop.permute.xlu0 %194
    %197 = vset.pattern.permute.xlu0 2
    %198 = vperm.xlu0 %197, %v158
    %v199 = vpop.permute.xlu0 %198
    %v201 = vadd.f32 %v191, %v195
    %v202 = vadd.f32 %v192, %v199
    %v203 = vtanh.pop %v201
    %v204 = vtanh.pop %v202
    %v205 = vpack.c.bf16 %v106, %v106
    %v222 = vunpack.c.l.b16 %v108
    %v223 = vunpack.c.l.b16 %v109
    %v224 = vunpack.c.l.b16 %v110
    %v225 = vunpack.c.l.b16 %v111
    %v226 = vunpack.c.l.b16 %v112
    %v227 = vunpack.c.l.b16 %v113
    %v228 = vunpack.c.l.b16 %v114
    %v229 = vunpack.c.l.b16 %v115
    %v230 = vunpack.c.l.b16 %v116
    %v231 = vunpack.c.l.b16 %v117
    %v232 = vunpack.c.l.b16 %v118
    %v233 = vunpack.c.l.b16 %v119
    %v234 = vunpack.c.l.b16 %v120
    %v235 = vunpack.c.l.b16 %v121
    %v236 = vunpack.c.l.b16 %v122
    %v237 = vunpack.c.l.b16 %v123
    %v238 = vpack.c.b16 %v223, %v222
    %v239 = vpack.c.b16 %v225, %v224
    %v240 = vpack.c.b16 %v227, %v226
    %v241 = vpack.c.b16 %v229, %v228
    %v242 = vpack.c.b16 %v231, %v230
    %v243 = vpack.c.b16 %v233, %v232
    %v244 = vpack.c.b16 %v235, %v234
    %v245 = vpack.c.b16 %v237, %v236
    %254 = vmatprep.subr.bf16.mxu0 0
    %255 = vmatpush1.bf16.msra.mxu0 %v245
    %256 = vmatprep.subr.bf16.mxu0 0
    %257 = vmatpush1.bf16.msra.mxu0 %v244
    %258 = vmatprep.subr.bf16.mxu0 0
    %259 = vmatpush1.bf16.msra.mxu0 %v243
    %260 = vmatprep.subr.bf16.mxu0 0
    %261 = vmatpush1.bf16.msra.mxu0 %v242
    %262 = vmatprep.subr.bf16.mxu0 0
    %263 = vmatpush1.bf16.msra.mxu0 %v241
    %264 = vmatprep.subr.bf16.mxu0 0
    %265 = vmatpush1.bf16.msra.mxu0 %v240
    %266 = vmatprep.subr.bf16.mxu0 0
    %267 = vmatpush1.bf16.msra.mxu0 %v239
    %268 = vmatprep.subr.bf16.mxu0 0
    %269 = vmatpush1.bf16.msra.mxu0 %v238
    %270 = vmatprep.subr.bf16.mxu0 0
    %271 = vmatpush2.bf16.msra.mxu0 0
    %272 = vmatprep.subr.bf16.mxu0 0
    %273 = vmatpush2.bf16.msra.mxu0 0
    %274 = vmatprep.subr.bf16.mxu0 0
    %275 = vmatpush2.bf16.msra.mxu0 0
    %276 = vmatprep.subr.bf16.mxu0 0
    %277 = vmatpush2.bf16.msra.mxu0 0
    %278 = vmatprep.subr.bf16.mxu0 0
    %279 = vmatpush2.bf16.msra.mxu0 0
    %280 = vmatprep.subr.bf16.mxu0 0
    %281 = vmatpush2.bf16.msra.mxu0 0
    %282 = vmatprep.subr.bf16.mxu0 0
    %283 = vmatpush2.bf16.msra.mxu0 0
    %284 = vmatprep.subr.bf16.mxu0 0
    %285 = vmatpush2.bf16.msra.mxu0 0
    %286 = vmatprep.mubr.bf16.mxu0 0
    %287 = vmatmul.mubr.bf16.gmra.mxu0 %v205
    %v288 = vpop.f32.mrf.mxu0
    %v289 = vadd.f32 0.0, %v288
    %v290 = vpop.f32.mrf.mxu0
    %v291 = vpop.f32.mrf.mxu0
    %v292 = vpop.f32.mrf.mxu0
    %293 = vdwg.mxu0
    %v294 = vlaneseq
    %v295 = vshrl.u32 %v294, 7
    %v296 = vsub.s32 0, %v295
    %v297 = vrot.slane %v289, %v296
    %v298 = vmul.f32 %v297, %v203
    %v299 = vadd.f32 %v298, 0.0
    %v300 = vlaneseq
    %v301 = vshrl.u32 %v300, 7
    %v302 = vsub.s32 1, %v301
    %v303 = vrot.slane %v289, %v302
    %v304 = vmul.f32 %v303, %v203
    %v306 = vrot.slane %v304, 3
    %v308 = vadd.f32 %v299, %v306
    %v309 = vlaneseq
    %v310 = vshrl.u32 %v309, 7
    %v311 = vsub.s32 2, %v310
    %v312 = vrot.slane %v289, %v311
    %v313 = vmul.f32 %v312, %v203
    %v314 = vmul.f32 %v312, %v204
    %vm317 = vcmask 1041408
    %v318 = vrot.slane %v313, 6
    %v319 = vrot.slane %v314, 6
    %v320 = vsel %vm317, %v318, %v319
    %v322 = vadd.f32 %v308, %v320
    %v323 = vpack.c.bf16 %v322, %v322
    %v340 = vunpack.c.l.b16 %v124
    %v341 = vunpack.c.l.b16 %v125
    %v342 = vunpack.c.l.b16 %v126
    %v343 = vunpack.c.l.b16 %v127
    %v344 = vunpack.c.l.b16 %v128
    %v345 = vunpack.c.l.b16 %v129
    %v346 = vunpack.c.l.b16 %v130
    %v347 = vunpack.c.l.b16 %v131
    %v348 = vunpack.c.l.b16 %v132
    %v349 = vunpack.c.l.b16 %v133
    %v350 = vunpack.c.l.b16 %v134
    %v351 = vunpack.c.l.b16 %v135
    %v352 = vunpack.c.l.b16 %v136
    %v353 = vunpack.c.l.b16 %v137
    %v354 = vunpack.c.l.b16 %v138
    %v355 = vunpack.c.l.b16 %v139
    %v356 = vpack.c.b16 %v341, %v340
    %v357 = vpack.c.b16 %v343, %v342
    %v358 = vpack.c.b16 %v345, %v344
    %v359 = vpack.c.b16 %v347, %v346
    %v360 = vpack.c.b16 %v349, %v348
    %v361 = vpack.c.b16 %v351, %v350
    %v362 = vpack.c.b16 %v353, %v352
    %v363 = vpack.c.b16 %v355, %v354
    %372 = vmatprep.subr.bf16.mxu0 0
    %373 = vmatpush1.bf16.msra.mxu0 %v363
    %374 = vmatprep.subr.bf16.mxu0 0
    %375 = vmatpush1.bf16.msra.mxu0 %v362
    %376 = vmatprep.subr.bf16.mxu0 0
    %377 = vmatpush1.bf16.msra.mxu0 %v361
    %378 = vmatprep.subr.bf16.mxu0 0
    %379 = vmatpush1.bf16.msra.mxu0 %v360
    %380 = vmatprep.subr.bf16.mxu0 0
    %381 = vmatpush1.bf16.msra.mxu0 %v359
    %382 = vmatprep.subr.bf16.mxu0 0
    %383 = vmatpush1.bf16.msra.mxu0 %v358
    %384 = vmatprep.subr.bf16.mxu0 0
    %385 = vmatpush1.bf16.msra.mxu0 %v357
    %386 = vmatprep.subr.bf16.mxu0 0
    %387 = vmatpush1.bf16.msra.mxu0 %v356
    %388 = vmatprep.subr.bf16.mxu0 0
    %389 = vmatpush2.bf16.msra.mxu0 0
    %390 = vmatprep.subr.bf16.mxu0 0
    %391 = vmatpush2.bf16.msra.mxu0 0
    %392 = vmatprep.subr.bf16.mxu0 0
    %393 = vmatpush2.bf16.msra.mxu0 0
    %394 = vmatprep.subr.bf16.mxu0 0
    %395 = vmatpush2.bf16.msra.mxu0 0
    %396 = vmatprep.subr.bf16.mxu0 0
    %397 = vmatpush2.bf16.msra.mxu0 0
    %398 = vmatprep.subr.bf16.mxu0 0
    %399 = vmatpush2.bf16.msra.mxu0 0
    %400 = vmatprep.subr.bf16.mxu0 0
    %401 = vmatpush2.bf16.msra.mxu0 0
    %402 = vmatprep.subr.bf16.mxu0 0
    %403 = vmatpush2.bf16.msra.mxu0 0
    %404 = vmatprep.mubr.bf16.mxu0 0
    %405 = vmatmul.mubr.bf16.gmra.mxu0 %v323
    %v406 = vpop.f32.mrf.mxu0
    %v407 = vadd.f32 0.0, %v406
    %v408 = vpop.f32.mrf.mxu0
    %v409 = vpop.f32.mrf.mxu0
    %v410 = vpop.f32.mrf.mxu0
    %411 = vdwg.mxu0
    %v412 = vlaneseq
    %v413 = vshrl.u32 %v412, 7
    %v414 = vsub.s32 0, %v413
    %v415 = vrot.slane %v156, %v414
    %v416 = vmul.f32 %v407, %v415
    %417 = vset.pattern.permute.xlu0 6
    %418 = vperm.xlu0 %417, %v157
    %v419 = vpop.permute.xlu0 %418
    %v421 = vlaneseq
    %v422 = vshrl.u32 %v421, 7
    %v423 = vsub.s32 0, %v422
    %v424 = vrot.slane %v106, %v423
    %v425 = vmul.f32 %v419, %v424
    %v426 = vadd.f32 %v425, 0.0
    %427 = vset.pattern.permute.xlu0 7
    %428 = vperm.xlu0 %427, %v157
    %v429 = vpop.permute.xlu0 %428
    %v431 = vlaneseq
    %v432 = vshrl.u32 %v431, 7
    %v433 = vsub.s32 1, %v432
    %v434 = vrot.slane %v106, %v433
    %v435 = vmul.f32 %v429, %v434
    %v436 = vadd.f32 %v426, %v435
    %437 = vset.pattern.permute.xlu0 8
    %438 = vperm.xlu0 %437, %v157
    %v439 = vpop.permute.xlu0 %438
    %v441 = vlaneseq
    %v442 = vshrl.u32 %v441, 7
    %v443 = vsub.s32 2, %v442
    %v444 = vrot.slane %v106, %v443
    %v445 = vmul.f32 %v439, %v444
    %v446 = vadd.f32 %v436, %v445
    %v447 = vadd.f32 %v416, %v446
    %448 = vset.pattern.permute.xlu0 9
    %449 = vperm.xlu0 %448, %v157
    %v450 = vpop.permute.xlu0 %449
    %v452 = vadd.f32 %v447, %v450
    %v453 = vlaneseq
    %v454 = vshrl.u32 %v453, 7
    %v455 = vsub.s32 2, %v454
    %v456 = vrot.slane %v156, %v455
    %v457 = vmul.f32 %v452, %v456
    %vm458 = vcmask 1042432
    %v459 = vsel %vm458, %v457, 0.0
    %460 = vadd.xlane.f32.xlu0 %v459
    %v461 = vpop.xlane.xlu0 %460
    %v462 = vmul.f32 %v461, 0.083333336
    %v463 = vsub.f32 %v452, %v462
    %v464 = vmul.f32 %v463, %v456
    %v465 = vmul.f32 %v464, %v464
    %v466 = vsel %vm458, %v465, 0.0
    %467 = vadd.xlane.f32.xlu0 %v466
    %v468 = vpop.xlane.xlu0 %467
    %v469 = vmul.f32 %v468, 0.083333336
    %v470 = vadd.f32 %v469, 1e-05
    %v471 = vrsqrt.pop %v470
    %v472 = vmul.f32 %v463, %v471
    %473 = vset.pattern.permute.xlu0 10
    %474 = vperm.xlu0 %473, %v157
    %v475 = vpop.permute.xlu0 %474
    %v477 = vmul.f32 %v472, %v475
    %478 = vset.pattern.permute.xlu0 11
    %479 = vperm.xlu0 %478, %v157
    %v480 = vpop.permute.xlu0 %479
    %v482 = vadd.f32 %v477, %v480
    %483 = vset.pattern.permute.xlu0 3
    %484 = vperm.xlu0 %483, %v157
    %v485 = vpop.permute.xlu0 %484
    %487 = vset.pattern.permute.xlu0 3
    %488 = vperm.xlu0 %487, %v158
    %v489 = vpop.permute.xlu0 %488
    %v491 = vmul.f32 %v485, %v172
    %v492 = vmul.f32 %v489, %v172
    %v493 = vadd.f32 %v491, 0.0
    %v494 = vadd.f32 %v492, 0.0
    %495 = vset.pattern.permute.xlu0 4
    %496 = vperm.xlu0 %495, %v157
    %v497 = vpop.permute.xlu0 %496
    %499 = vset.pattern.permute.xlu0 4
    %500 = vperm.xlu0 %499, %v158
    %v501 = vpop.permute.xlu0 %500
    %v503 = vmul.f32 %v497, %v188
    %v504 = vmul.f32 %v501, %v188
    %v505 = vadd.f32 %v493, %v503
    %v506 = vadd.f32 %v494, %v504
    %507 = vset.pattern.permute.xlu0 5
    %508 = vperm.xlu0 %507, %v157
    %v509 = vpop.permute.xlu0 %508
    %511 = vset.pattern.permute.xlu0 5
    %512 = vperm.xlu0 %511, %v158
    %v513 = vpop.permute.xlu0 %512
    %v515 = vadd.f32 %v505, %v509
    %v516 = vadd.f32 %v506, %v513
    %v517 = vmax.f32 %v515, 0.0
    %v518 = vmax.f32 %v516, 0.0
    %v519 = vpack.c.bf16 %v482, %v482
    %520 = vmatprep.subr.bf16.mxu0 0
    %521 = vmatpush1.bf16.msra.mxu0 %v245
    %522 = vmatprep.subr.bf16.mxu0 0
    %523 = vmatpush1.bf16.msra.mxu0 %v244
    %524 = vmatprep.subr.bf16.mxu0 0
    %525 = vmatpush1.bf16.msra.mxu0 %v243
    %526 = vmatprep.subr.bf16.mxu0 0
    %527 = vmatpush1.bf16.msra.mxu0 %v242
    %528 = vmatprep.subr.bf16.mxu0 0
    %529 = vmatpush1.bf16.msra.mxu0 %v241
    %530 = vmatprep.subr.bf16.mxu0 0
    %531 = vmatpush1.bf16.msra.mxu0 %v240
    %532 = vmatprep.subr.bf16.mxu0 0
    %533 = vmatpush1.bf16.msra.mxu0 %v239
    %534 = vmatprep.subr.bf16.mxu0 0
    %535 = vmatpush1.bf16.msra.mxu0 %v238
    %536 = vmatprep.subr.bf16.mxu0 0
    %537 = vmatpush2.bf16.msra.mxu0 0
    %538 = vmatprep.subr.bf16.mxu0 0
    %539 = vmatpush2.bf16.msra.mxu0 0
    %540 = vmatprep.subr.bf16.mxu0 0
    %541 = vmatpush2.bf16.msra.mxu0 0
    %542 = vmatprep.subr.bf16.mxu0 0
    %543 = vmatpush2.bf16.msra.mxu0 0
    %544 = vmatprep.subr.bf16.mxu0 0
    %545 = vmatpush2.bf16.msra.mxu0 0
    %546 = vmatprep.subr.bf16.mxu0 0
    %547 = vmatpush2.bf16.msra.mxu0 0
    %548 = vmatprep.subr.bf16.mxu0 0
    %549 = vmatpush2.bf16.msra.mxu0 0
    %550 = vmatprep.subr.bf16.mxu0 0
    %551 = vmatpush2.bf16.msra.mxu0 0
    %552 = vmatprep.mubr.bf16.mxu0 0
    %553 = vmatmul.mubr.bf16.gmra.mxu0 %v519
    %v554 = vpop.f32.mrf.mxu0
    %v555 = vadd.f32 0.0, %v554
    %v556 = vpop.f32.mrf.mxu0
    %v557 = vpop.f32.mrf.mxu0
    %v558 = vpop.f32.mrf.mxu0
    %559 = vdwg.mxu0
    %v560 = vlaneseq
    %v561 = vshrl.u32 %v560, 7
    %v562 = vsub.s32 0, %v561
    %v563 = vrot.slane %v555, %v562
    %v564 = vmul.f32 %v563, %v517
    %v565 = vadd.f32 %v564, 0.0
    %v566 = vlaneseq
    %v567 = vshrl.u32 %v566, 7
    %v568 = vsub.s32 1, %v567
    %v569 = vrot.slane %v555, %v568
    %v570 = vmul.f32 %v569, %v517
    %v572 = vrot.slane %v570, 3
    %v574 = vadd.f32 %v565, %v572
    %v575 = vlaneseq
    %v576 = vshrl.u32 %v575, 7
    %v577 = vsub.s32 2, %v576
    %v578 = vrot.slane %v555, %v577
    %v579 = vmul.f32 %v578, %v517
    %v580 = vmul.f32 %v578, %v518
    %v583 = vrot.slane %v579, 6
    %v584 = vrot.slane %v580, 6
    %v585 = vsel %vm317, %v583, %v584
    %v587 = vadd.f32 %v574, %v585
    %v588 = vpack.c.bf16 %v587, %v587
    %589 = vmatprep.subr.bf16.mxu0 0
    %590 = vmatpush1.bf16.msra.mxu0 %v363
    %591 = vmatprep.subr.bf16.mxu0 0
    %592 = vmatpush1.bf16.msra.mxu0 %v362
    %593 = vmatprep.subr.bf16.mxu0 0
    %594 = vmatpush1.bf16.msra.mxu0 %v361
    %595 = vmatprep.subr.bf16.mxu0 0
    %596 = vmatpush1.bf16.msra.mxu0 %v360
    %597 = vmatprep.subr.bf16.mxu0 0
    %598 = vmatpush1.bf16.msra.mxu0 %v359
    %599 = vmatprep.subr.bf16.mxu0 0
    %600 = vmatpush1.bf16.msra.mxu0 %v358
    %601 = vmatprep.subr.bf16.mxu0 0
    %602 = vmatpush1.bf16.msra.mxu0 %v357
    %603 = vmatprep.subr.bf16.mxu0 0
    %604 = vmatpush1.bf16.msra.mxu0 %v356
    %605 = vmatprep.subr.bf16.mxu0 0
    %606 = vmatpush2.bf16.msra.mxu0 0
    %607 = vmatprep.subr.bf16.mxu0 0
    %608 = vmatpush2.bf16.msra.mxu0 0
    %609 = vmatprep.subr.bf16.mxu0 0
    %610 = vmatpush2.bf16.msra.mxu0 0
    %611 = vmatprep.subr.bf16.mxu0 0
    %612 = vmatpush2.bf16.msra.mxu0 0
    %613 = vmatprep.subr.bf16.mxu0 0
    %614 = vmatpush2.bf16.msra.mxu0 0
    %615 = vmatprep.subr.bf16.mxu0 0
    %616 = vmatpush2.bf16.msra.mxu0 0
    %617 = vmatprep.subr.bf16.mxu0 0
    %618 = vmatpush2.bf16.msra.mxu0 0
    %619 = vmatprep.subr.bf16.mxu0 0
    %620 = vmatpush2.bf16.msra.mxu0 0
    %621 = vmatprep.mubr.bf16.mxu0 0
    %622 = vmatmul.mubr.bf16.gmra.mxu0 %v588
    %v623 = vpop.f32.mrf.mxu0
    %v624 = vadd.f32 0.0, %v623
    %v625 = vpop.f32.mrf.mxu0
    %v626 = vpop.f32.mrf.mxu0
    %v627 = vpop.f32.mrf.mxu0
    %628 = vdwg.mxu0
    %v629 = vmul.f32 %v624, %v415
    %v630 = vlaneseq
    %v631 = vshrl.u32 %v630, 7
    %v632 = vsub.s32 0, %v631
    %v633 = vrot.slane %v482, %v632
    %v634 = vmul.f32 %v419, %v633
    %v635 = vadd.f32 %v634, 0.0
    %v636 = vlaneseq
    %v637 = vshrl.u32 %v636, 7
    %v638 = vsub.s32 1, %v637
    %v639 = vrot.slane %v482, %v638
    %v640 = vmul.f32 %v429, %v639
    %v641 = vadd.f32 %v635, %v640
    %v642 = vlaneseq
    %v643 = vshrl.u32 %v642, 7
    %v644 = vsub.s32 2, %v643
    %v645 = vrot.slane %v482, %v644
    %v646 = vmul.f32 %v439, %v645
    %v647 = vadd.f32 %v641, %v646
    %v649 = vrot.slane %v647, 3
    %v651 = vadd.f32 %v629, %v649
    %v652 = vrot.slane %v450, 3
    %v654 = vadd.f32 %v651, %v652
    %v655 = vmul.f32 %v654, %v456
    %v656 = vsel %vm458, %v655, 0.0
    %657 = vadd.xlane.f32.xlu0 %v656
    %v658 = vpop.xlane.xlu0 %657
    %v659 = vmul.f32 %v658, 0.083333336
    %v660 = vsub.f32 %v654, %v659
    %v661 = vmul.f32 %v660, %v456
    %v662 = vmul.f32 %v661, %v661
    %v663 = vsel %vm458, %v662, 0.0
    %664 = vadd.xlane.f32.xlu0 %v663
    %v665 = vpop.xlane.xlu0 %664
    %v666 = vmul.f32 %v665, 0.083333336
    %v667 = vadd.f32 %v666, 1e-05
    %v668 = vrsqrt.pop %v667
    %v669 = vmul.f32 %v660, %v668
    %v670 = vrot.slane %v475, 3
    %v672 = vmul.f32 %v669, %v670
    %v673 = vrot.slane %v480, 3
    %v675 = vadd.f32 %v672, %v673
    %v676 = vpack.c.bf16 %v675, %v675
    %v693 = vunpack.c.l.b16 %v140
    %v694 = vunpack.c.l.b16 %v141
    %v695 = vunpack.c.l.b16 %v142
    %v696 = vunpack.c.l.b16 %v143
    %v697 = vunpack.c.l.b16 %v144
    %v698 = vunpack.c.l.b16 %v145
    %v699 = vunpack.c.l.b16 %v146
    %v700 = vunpack.c.l.b16 %v147
    %v701 = vunpack.c.l.b16 %v148
    %v702 = vunpack.c.l.b16 %v149
    %v703 = vunpack.c.l.b16 %v150
    %v704 = vunpack.c.l.b16 %v151
    %v705 = vunpack.c.l.b16 %v152
    %v706 = vunpack.c.l.b16 %v153
    %v707 = vunpack.c.l.b16 %v154
    %v708 = vunpack.c.l.b16 %v155
    %v709 = vpack.c.b16 %v694, %v693
    %v710 = vpack.c.b16 %v696, %v695
    %v711 = vpack.c.b16 %v698, %v697
    %v712 = vpack.c.b16 %v700, %v699
    %v713 = vpack.c.b16 %v702, %v701
    %v714 = vpack.c.b16 %v704, %v703
    %v715 = vpack.c.b16 %v706, %v705
    %v716 = vpack.c.b16 %v708, %v707
    %725 = vmatprep.subr.bf16.mxu0 0
    %726 = vmatpush1.bf16.msra.mxu0 %v716
    %727 = vmatprep.subr.bf16.mxu0 0
    %728 = vmatpush1.bf16.msra.mxu0 %v715
    %729 = vmatprep.subr.bf16.mxu0 0
    %730 = vmatpush1.bf16.msra.mxu0 %v714
    %731 = vmatprep.subr.bf16.mxu0 0
    %732 = vmatpush1.bf16.msra.mxu0 %v713
    %733 = vmatprep.subr.bf16.mxu0 0
    %734 = vmatpush1.bf16.msra.mxu0 %v712
    %735 = vmatprep.subr.bf16.mxu0 0
    %736 = vmatpush1.bf16.msra.mxu0 %v711
    %737 = vmatprep.subr.bf16.mxu0 0
    %738 = vmatpush1.bf16.msra.mxu0 %v710
    %739 = vmatprep.subr.bf16.mxu0 0
    %740 = vmatpush1.bf16.msra.mxu0 %v709
    %741 = vmatprep.subr.bf16.mxu0 0
    %742 = vmatpush2.bf16.msra.mxu0 0
    %743 = vmatprep.subr.bf16.mxu0 0
    %744 = vmatpush2.bf16.msra.mxu0 0
    %745 = vmatprep.subr.bf16.mxu0 0
    %746 = vmatpush2.bf16.msra.mxu0 0
    %747 = vmatprep.subr.bf16.mxu0 0
    %748 = vmatpush2.bf16.msra.mxu0 0
    %749 = vmatprep.subr.bf16.mxu0 0
    %750 = vmatpush2.bf16.msra.mxu0 0
    %751 = vmatprep.subr.bf16.mxu0 0
    %752 = vmatpush2.bf16.msra.mxu0 0
    %753 = vmatprep.subr.bf16.mxu0 0
    %754 = vmatpush2.bf16.msra.mxu0 0
    %755 = vmatprep.subr.bf16.mxu0 0
    %756 = vmatpush2.bf16.msra.mxu0 0
    %757 = vmatprep.mubr.bf16.mxu0 0
    %758 = vmatmul.mubr.bf16.gmra.mxu0 %v676
    %v759 = vpop.f32.mrf.mxu0
    %v760 = vadd.f32 0.0, %v759
    %v761 = vpop.f32.mrf.mxu0
    %v762 = vpop.f32.mrf.mxu0
    %v763 = vpop.f32.mrf.mxu0
    %764 = vdwg.mxu0
    %v765 = vlaneseq
    %v766 = vshrl.u32 %v765, 7
    %v767 = vsub.s32 1, %v766
    %v768 = vrot.slane %v156, %v767
    %v769 = vmul.f32 %v760, %v768
    %v771 = vrot.slane %v760, 2
    %v773 = vmul.f32 %v419, %v771
    %v774 = vadd.f32 %v773, 0.0
    %v776 = vrot.slane %v769, 2
    %v778 = vmul.f32 %v450, %v776
    %v779 = vadd.f32 %v774, %v778
    %v780 = vrot.slane %v760, 3
    %v782 = vmul.f32 %v429, %v780
    %v783 = vadd.f32 %v779, %v782
    %v784 = vrot.slane %v769, 3
    %v786 = vmul.f32 %v475, %v784
    %v787 = vadd.f32 %v783, %v786
    %v788 = vrot.slane %v760, 4
    %v790 = vmul.f32 %v439, %v788
    %v791 = vadd.f32 %v787, %v790
    %v792 = vrot.slane %v769, 4
    %v794 = vmul.f32 %v480, %v792
    %v795 = vadd.f32 %v791, %v794
    %v796 = vrot.slane %v419, 1
    %v798 = vadd.f32 %v795, %v796
    %vm799 = vcmp.gt.f32.partialorder %v798, 0.0
    %v800 = vmin.f32 %v798, 0.0
    %v801 = vmul.f32 %v800, 1.442695
    %v802 = vpow.pop %v801
    %v803 = vsub.f32 %v802, 1.0
    %v804 = vsel %vm799, %v798, %v803
    %805 = vst [vmem:[#allocation13 - $0x6] sm:$0x40] %v804
    // Predicated region
    $region54: #{tpu_custom_call.1} parent=1 // pred_check
      _
    $region55: #{tpu_custom_call.1} parent=1 // pred_check_branch
      %807 = sbr.rel (0) target = $region57
    $region56: #{tpu_custom_call.1} parent=1 // pred_region
      %s809 = ssub.s32 16, 16
      %810 = vsyncadd [#allocation4], %s809
      %s812 = sshll.u32 [#allocation13], 4
      %s813 = int_to_ptr.vmem [resolvable:$true] %s812
      %815 = dma.vmem_to_hbm [thread:$0]  %s813, 16, %s7, [#allocation4]
    $region57: #{tpu_custom_call.1} parent=1 // pred_fallthru
      _
    // Predicated region
    $region58: #{tpu_custom_call.1} parent=1 // pred_check
      _
    $region59: #{tpu_custom_call.1} parent=1 // pred_check_branch
      %817 = sbr.rel (0) target = $region61
    $region60: #{tpu_custom_call.1} parent=1 // pred_region
      %818 = dma.done [#allocation4], 16
    $region61: #{tpu_custom_call.1} parent=1 // pred_fallthru
      _
    %819 = vsyncpa [#allocation3], 1
    %820 = vsyncpa [#allocation6], 1
    %821 = vsyncpa [#allocation9], 1
    %822 = vsyncpa [#allocation12], 1
    %823 = vsyncpa [#allocation4], 1

</llo_original>
